<compile_context>
chip_gen: v7x
topology: tpu7x:2x2x1
jax: 0.10.0
libtpu: 0.0.40
codegen_flags: <defaults>
</compile_context>

<pallas_src>
import functools

import jax
import jax.numpy as jnp
from jax.experimental import pallas as pl
from jax.experimental.pallas import tpu as pltpu


def _sublane_quantum(dtype):
    """Minimum sublane tile: 8 for 32-bit, 16 for 16-bit, 32 for 8-bit dtypes."""
    return max(8, 32 // max(jnp.dtype(dtype).itemsize, 1))


def _tpu_tuning():
    """Per-generation (target_tile_bytes, vmem_limit_bytes)."""
    kind = ""
    try:
        kind = jax.devices()[0].device_kind.lower()
    except Exception:
        pass
    if "v7" in kind or "7x" in kind:
        # 3.2 TB/s HBM: big tiles amortize the ~0.35us/step overhead; 64 MiB phys VMEM.
        return 6 << 20, 48 << 20
    if "v6" in kind:
        # ~1.4 TB/s HBM; 128 MiB phys VMEM but scoped default is only 32 MiB.
        return 6 << 20, 64 << 20
    if "v5" in kind:
        # ~820 GB/s HBM: 2 MiB tiles already ~5us/step; just raise the 16 MiB default.
        return 2 << 20, 32 << 20
    return 4 << 20, 48 << 20


def _choose_tiles(rows, cols, itemsize, quantum, target_bytes, min_steps=4):
    """Pick (tile_rows, tile_cols): lane-dense col tile, dtype-aware row quantum,
    tile size near target_bytes, and enough grid steps for megacore sharding."""
    # Column tile: multiple of 128 lanes (unmasked full-width vst) unless cols isn't.
    if cols % 128 == 0:
        max_cols = max(128, (target_bytes // max(quantum * itemsize, 1)) // 128 * 128)
        tile_cols = min(cols, max_cols)
    else:
        tile_cols = cols            # full dim is always a legal block size
    # Row tile: multiple of the sublane quantum, sized so the tile ~= target_bytes.
    row_bytes = tile_cols * itemsize
    tile_rows = max(quantum, (target_bytes // max(row_bytes, 1)) // quantum * quantum)
    if rows >= quantum:
        tile_rows = min(tile_rows, (rows // quantum) * quantum)
    else:
        tile_rows = rows            # tiny row count: single full-dim block
    # Keep a few grid steps so "parallel" megacore sharding (v7x) has work to split.
    while (tile_rows > quantum
           and pl.cdiv(rows, tile_rows) * pl.cdiv(cols, tile_cols) < min_steps):
        tile_rows = max(quantum, (tile_rows // 2) // quantum * quantum)
    return tile_rows, tile_cols


def _make_affine_kernel(tile_rows, resident_params):
    def kernel(x_ref, scale_ref, shift_ref, o_ref):
        if resident_params:
            # Params are resident (full (rows_pad,1) block); slice this tile's rows.
            r0 = pl.multiple_of(pl.program_id(0) * tile_rows, tile_rows)
            s = scale_ref[pl.ds(r0, tile_rows), :]
            b = shift_ref[pl.ds(r0, tile_rows), :]
        else:
            s = scale_ref[...]
            b = shift_ref[...]
        x = x_ref[...].astype(jnp.float32)
        o_ref[...] = (x * s + b).astype(o_ref.dtype)
    return kernel


@functools.partial(jax.jit, donate_argnums=(0,))
def random_apply(x_nchw, scale_c, shift_c, p, key):
    """RandomApply(fn, p)(x) with fn = per-channel affine transform."""
    N, C, H, W = x_nchw.shape
    dtype = x_nchw.dtype
    rows, cols = N * C, H * W
    itemsize = jnp.dtype(dtype).itemsize
    quantum = _sublane_quantum(dtype)
    target_bytes, vmem_limit = _tpu_tuning()

    # Coin flip: apply fn iff uniform() <= p (matches torch RandomApply).
    u = jax.random.uniform(key, (), dtype=jnp.float32)
    do_apply = u <= jnp.asarray(p, jnp.float32)

    # Lane-dense 2-D slab; row r maps to channel r % C.
    x2d = x_nchw.reshape(rows, cols)

    tile_rows, tile_cols = _choose_tiles(rows, cols, itemsize, quantum, target_bytes)
    grid_rows = pl.cdiv(rows, tile_rows)
    grid_cols = pl.cdiv(cols, tile_cols)
    rows_pad = grid_rows * tile_rows   # pad params so in-kernel row slices never go OOB

    def pad_param(v):
        flat = jnp.tile(v.astype(jnp.float32), (N,))
        return jnp.pad(flat, (0, rows_pad - rows)).reshape(rows_pad, 1)

    scale2d = pad_param(scale_c)
    shift2d = pad_param(shift_c)

    # Keep the tiny per-row params resident (fetched once) unless N*C is huge.
    resident = rows_pad * 128 * 4 <= (2 << 20)   # lane-padded VMEM footprint per buffer
    if resident:
        param_spec = pl.BlockSpec((rows_pad, 1), lambda i, j: (0, 0))
    else:
        param_spec = pl.BlockSpec((tile_rows, 1), lambda i, j: (i, 0))

    kernel = _make_affine_kernel(tile_rows, resident)

    def apply_branch(x2d, scale2d, shift2d):
        return pl.pallas_call(
            kernel,
            out_shape=jax.ShapeDtypeStruct((rows, cols), dtype),
            grid=(grid_rows, grid_cols),
            in_specs=[
                pl.BlockSpec((tile_rows, tile_cols), lambda i, j: (i, j)),
                param_spec,
                param_spec,
            ],
            out_specs=pl.BlockSpec((tile_rows, tile_cols), lambda i, j: (i, j)),
            # Elementwise with identical in/out index maps -> safe to write in place.
            input_output_aliases={0: 0},
            compiler_params=pltpu.CompilerParams(
                dimension_semantics=("parallel", "parallel"),
                vmem_limit_bytes=vmem_limit),
            cost_estimate=pl.CostEstimate(
                flops=2 * rows * cols,
                transcendentals=0,
                bytes_accessed=2 * rows * cols * itemsize),
        )(x2d, scale2d, shift2d)

    def identity_branch(x2d, scale2d, shift2d):
        return x2d   # with donated x + aliasing this is zero HBM traffic

    out2d = jax.lax.cond(do_apply, apply_branch, identity_branch,
                         x2d, scale2d, shift2d)
    return out2d.reshape(N, C, H, W)


if __name__ == "__main__":
    key = jax.random.PRNGKey(0)
    k_x, k_coin = jax.random.split(key)

    N, C, H, W = 2, 4, 16, 16
    x = jax.random.normal(k_x, (N, C, H, W), dtype=jnp.float32)

    # Deterministic "fn" parameters (synthetic, no checkpoint).
    scale_c = 1.0 + 0.1 * jnp.arange(C, dtype=jnp.float32)
    shift_c = 0.01 * jnp.arange(C, dtype=jnp.float32)
    p = 0.8  # probability of applying fn

    # Reference (pure JAX) computed BEFORE the kernel call because x is donated.
    u = jax.random.uniform(k_coin, (), dtype=jnp.float32)
    apply_fn = bool(u <= p)
    fn_x = x * scale_c.reshape(1, C, 1, 1) + shift_c.reshape(1, C, 1, 1)
    ref = fn_x if apply_fn else (x + 0.0)   # independent buffer (x gets donated)
    ref = jax.block_until_ready(ref)

    out = random_apply(x, scale_c, shift_c, p, k_coin)
    out = jax.block_until_ready(out)

    assert out.shape == (N, C, H, W)
    assert jnp.allclose(out, ref, atol=1e-6, rtol=1e-6), "mismatch vs reference"
    print("KERNEL_OK")
</pallas_src>

<mosaic_0001>
module attributes {stable_mosaic.version = 11 : i64} {
  func.func @kernel(%arg0: i32, %arg1: i32, %arg2: memref<8x256xf32, #tpu.memory_space<vmem>>, %arg3: memref<8x1xf32, #tpu.memory_space<vmem>>, %arg4: memref<8x1xf32, #tpu.memory_space<vmem>>, %arg5: memref<8x256xf32, #tpu.memory_space<vmem>>) attributes {dimension_semantics = [#tpu.dimension_semantics<parallel>, #tpu.dimension_semantics<parallel>], iteration_bounds = array<i64: 1, 1>, scalar_prefetch = 0 : i64, scratch_operands = 0 : i64, tpu.core_type = #tpu.core_type<tc>, window_params = [{transform_indices = @transform_0, window_bounds = array<i64: 8, 256>}, {pipeline_mode = #tpu.pipeline_mode<synchronous>, transform_indices = @transform_1, window_bounds = array<i64: 8, 1>}, {pipeline_mode = #tpu.pipeline_mode<synchronous>, transform_indices = @transform_2, window_bounds = array<i64: 8, 1>}, {transform_indices = @transform_3, window_bounds = array<i64: 8, 256>}]} {
    %c8_i32 = arith.constant 8 : i32
    %0 = arith.muli %arg0, %c8_i32 : i32
    %1 = tpu.assume_multiple %0, 8 : i32
    %2 = arith.index_cast %1 : i32 to index
    %c0 = arith.constant 0 : index
    %3 = vector.load %arg3[%2, %c0] : memref<8x1xf32, #tpu.memory_space<vmem>>, vector<8x1xf32>
    %4 = arith.index_cast %1 : i32 to index
    %c0_0 = arith.constant 0 : index
    %5 = vector.load %arg4[%4, %c0_0] : memref<8x1xf32, #tpu.memory_space<vmem>>, vector<8x1xf32>
    %c0_1 = arith.constant 0 : index
    %c0_2 = arith.constant 0 : index
    %6 = vector.load %arg2[%c0_1, %c0_2] : memref<8x256xf32, #tpu.memory_space<vmem>>, vector<8x256xf32>
    %7 = vector.broadcast %3 : vector<8x1xf32> to vector<8x256xf32>
    %8 = arith.mulf %6, %7 : vector<8x256xf32>
    %9 = vector.broadcast %5 : vector<8x1xf32> to vector<8x256xf32>
    %10 = arith.addf %8, %9 : vector<8x256xf32>
    %c0_3 = arith.constant 0 : index
    %c0_4 = arith.constant 0 : index
    %11 = vector.load %arg5[%c0_3, %c0_4] : memref<8x256xf32, #tpu.memory_space<vmem>>, vector<8x256xf32>
    tpu.vector_store %arg5[%c0_3, %c0_4], %10 {strides = array<i32>} : memref<8x256xf32, #tpu.memory_space<vmem>>, vector<8x256xf32>,
    return
  }
  func.func @transform_0(%arg0: i32, %arg1: i32) -> (i32, i32) {
    %c0_i32 = arith.constant 0 : i32
    return %arg0, %arg1 : i32, i32
  }
  func.func @transform_1(%arg0: i32, %arg1: i32) -> (i32, i32) {
    %c0_i32 = arith.constant 0 : i32
    %c0_i32_0 = arith.constant 0 : i32
    %c0_i32_1 = arith.constant 0 : i32
    return %c0_i32, %c0_i32_0 : i32, i32
  }
  func.func @transform_2(%arg0: i32, %arg1: i32) -> (i32, i32) {
    %c0_i32 = arith.constant 0 : i32
    %c0_i32_0 = arith.constant 0 : i32
    %c0_i32_1 = arith.constant 0 : i32
    return %c0_i32, %c0_i32_0 : i32, i32
  }
  func.func @transform_3(%arg0: i32, %arg1: i32) -> (i32, i32) {
    %c0_i32 = arith.constant 0 : i32
    return %arg0, %arg1 : i32, i32
  }
}

</mosaic_0001>

<llo_original>
// kernel: tile.1
$region0: #{tile.1}
  #allocation0 [shape = 's32[1]{0}', space=sflag, size = 0x4, scoped, tag = 'scoped memory for tile.1']
  %s0 = inlined_call_operand.vmem [shape: f32[4], index: 0, kind: input, shape index: {}]
  %s1 = inlined_call_operand.vmem [shape: f32[2,4], index: 1, kind: output, shape index: {}]
  // Predicated region
  $region2: #{tile.1} parent=0 // pred_check
    _
  $region3: #{tile.1} parent=0 // pred_check_branch
    %3 = sbr.rel (0) target = $region5
  $region4: #{tile.1} parent=0 // pred_region
    _
  $region5: #{tile.1} parent=0 // pred_fallthru
    _
  %v4 = vld [vmem:[%s0] ss:$0 sm:$0xff]
  %5 = vst [vmem:[%s1] sm:$0x3] %v4

// kernel: branch_1_fun.1
$region0: #{branch_1_fun.1}
  #allocation0 [shape = 'u32[]', space=smem, size = 0x4, offset = 0x4, fixed_abs, tag = 'smem constant byte address 0x4 - core index']
  #allocation1 [shape = 'u32[144,128]{1,0:T(1,128)}', space=vmem, size = 0x12000, scoped, tag = 'internal scratch']
  %s0 = inlined_call_operand.vmem [shape: f32[8,256], index: 0, kind: input, shape index: {}, may-alias: {0,3}]
  %s1 = inlined_call_operand.vmem [shape: f32[8,1], index: 1, kind: input, shape index: {}]
  %s2 = inlined_call_operand.vmem [shape: f32[8,1], index: 2, kind: input, shape index: {}]
  %s3 = inlined_call_operand.vmem [shape: f32[8,256], index: 3, kind: output, shape index: {}, may-alias: {0,3}]
  %s4 = sld [smem:[#allocation0]]
  $region22: #{branch_1_fun.1} parent=0
    _
  %s6 = ssub.s32 1, %s4
  %s7 = scalar_select 0, %s6, %s4
  // Predicated region
  $region2: #{branch_1_fun.1} parent=0 // pred_check
    _
  $region3: #{branch_1_fun.1} parent=0 // pred_check_branch
    %9 = sbr.rel (0) target = $region5
  $region4: #{branch_1_fun.1} parent=0 // pred_region
    _
  $region5: #{branch_1_fun.1} parent=0 // pred_fallthru
    _
  // Predicated region
  $region6: #{branch_1_fun.1} parent=0 // pred_check
    _
  $region7: #{branch_1_fun.1} parent=0 // pred_check_branch
    %11 = sbr.rel (0) target = $region9
  $region8: #{branch_1_fun.1} parent=0 // pred_region
    _
  $region9: #{branch_1_fun.1} parent=0 // pred_fallthru
    _
  // Predicated region
  $region10: #{branch_1_fun.1} parent=0 // pred_check
    _
  $region11: #{branch_1_fun.1} parent=0 // pred_check_branch
    %13 = sbr.rel (0) target = $region13
  $region12: #{branch_1_fun.1} parent=0 // pred_region
    _
  $region13: #{branch_1_fun.1} parent=0 // pred_fallthru
    _
  %s14 = smul.u32 0, 8
  %s15 = scalar_lea.vmem %s1, %s14
  %v16 = vld [vmem:[%s15] sm:$0xff]
  %s17 = scalar_lea.vmem %s2, %s14
  %v18 = vld [vmem:[%s17] sm:$0xff]
  %v19 = vld [vmem:[%s0] sm:$0xff]
  %v20 = vld [vmem:[%s0 + $0x8] sm:$0xff]
  %22 = vset.pattern.permute.xlu0 0
  %23 = vperm.xlu0 %22, %v16
  %v24 = vpop.permute.xlu0 %23
  %v26 = vmul.f32 %v19, %v24
  %v27 = vmul.f32 %v20, %v24
  %29 = vset.pattern.permute.xlu0 0
  %30 = vperm.xlu0 %29, %v18
  %v31 = vpop.permute.xlu0 %30
  %v33 = vadd.f32 %v26, %v31
  %v34 = vadd.f32 %v27, %v31
  %35 = vst [vmem:[%s3] sm:$0xff] %v33
  %36 = vst [vmem:[%s3 + $0x8] sm:$0xff] %v34
  // Predicated region
  $region14: #{branch_1_fun.1} parent=0 // pred_check
    _
  $region15: #{branch_1_fun.1} parent=0 // pred_check_branch
    %38 = sbr.rel (0) target = $region17
  $region16: #{branch_1_fun.1} parent=0 // pred_region
    _
  $region17: #{branch_1_fun.1} parent=0 // pred_fallthru
    _
  // Predicated region
  $region18: #{branch_1_fun.1} parent=0 // pred_check
    _
  $region19: #{branch_1_fun.1} parent=0 // pred_check_branch
    %40 = sbr.rel (0) target = $region21
  $region20: #{branch_1_fun.1} parent=0 // pred_region
    _
  $region21: #{branch_1_fun.1} parent=0 // pred_fallthru
    _

</llo_original>
